<compile_context>
chip_gen: v6e
topology: v6e:2x2x1
jax: 0.10.0
libtpu: 0.0.40
codegen_flags: <defaults>
</compile_context>

<pallas_src>
import jax
import jax.numpy as jnp
from jax.experimental import pallas as pl
from jax.experimental.pallas import tpu as pltpu

D_IN, D_H, D_OUT = 2, 20, 1
PAD = 128  # lane-padded hidden width (zero padding is mathematically inert)


def mlp_kernel(x_ref, w_ref, sb_ref, o_ref):
    x = x_ref[...]                       # (tile_n, 2) f32, unpadded
    w1a = sb_ref[0:1, :]                 # (1, 128)  W1 row 0
    w1b = sb_ref[1:2, :]                 # (1, 128)  W1 row 1
    b1 = sb_ref[2:3, :]                  # (1, 128)
    b2 = sb_ref[3:4, :]
    b3 = sb_ref[4:5, :]
    w4r = sb_ref[5:6, :]                 # (1, 128)  W4[:, 0]
    b4 = sb_ref[6:7, 0:1]                # (1, 1)

    # Layer 1 (K=2): pure VPU broadcast FMA — no 128-lane padding of x needed.
    h = jnp.tanh(x[:, 0:1] * w1a + x[:, 1:2] * w1b + b1)          # (tile_n, 128)
    # Layers 2-3: 128x128 MXU matmuls (hidden dim zero-padded 20 -> 128).
    h = jnp.tanh(jnp.dot(h, w_ref[0], preferred_element_type=jnp.float32) + b2)
    h = jnp.tanh(jnp.dot(h, w_ref[1], preferred_element_type=jnp.float32) + b3)
    # Layer 4 (output width 1): XLU lane reduce instead of a 128-wide matmul.
    out = jnp.sum(h * w4r, axis=-1, keepdims=True) + b4           # (tile_n, 1)
    o_ref[...] = out.astype(o_ref.dtype)


def init_params(key):
    """Deterministic init mimicking PyTorch Linear's U(-1/sqrt(fan_in), ...).

    Weights are stored as [in, out] (transposed vs. nn.Linear) so y = x @ W + b.
    """
    dims = [(D_IN, D_H), (D_H, D_H), (D_H, D_H), (D_H, D_OUT)]
    params = []
    for (fi, fo) in dims:
        key, kw, kb = jax.random.split(key, 3)
        bound = 1.0 / jnp.sqrt(jnp.float32(fi))
        w = jax.random.uniform(kw, (fi, fo), jnp.float32, -bound, bound)
        b = jax.random.uniform(kb, (fo,), jnp.float32, -bound, bound)
        params.append((w, b))
    return params


def pack_params(params):
    """Pad + pack the 8 parameter tensors into 2 operands, ONCE (not per call)."""
    (w1, b1), (w2, b2), (w3, b3), (w4, b4) = params
    wstack = jnp.zeros((2, PAD, PAD), jnp.float32)
    wstack = wstack.at[0, :D_H, :D_H].set(w2)
    wstack = wstack.at[1, :D_H, :D_H].set(w3)

    small = jnp.zeros((8, PAD), jnp.float32)
    small = small.at[0, :D_H].set(w1[0])        # W1 row 0
    small = small.at[1, :D_H].set(w1[1])        # W1 row 1
    small = small.at[2, :D_H].set(b1)
    small = small.at[3, :D_H].set(b2)
    small = small.at[4, :D_H].set(b3)
    small = small.at[5, :D_H].set(w4[:, 0])     # W4 column
    small = small.at[6, 0].set(b4[0])           # b4 scalar
    return wstack, small


def _choose_tile(n, max_tile=1024):
    # Big tiles amortise the ~0.35us per-grid-step overhead, but keep >=2 steps
    # when possible so both v7x TensorCores get work via the "parallel" axis.
    half = ((pl.cdiv(n, 2) + 7) // 8) * 8      # multiple of 8 (sublane rule)
    return max(8, min(max_tile, half))


def mlp_forward(x, wstack, small, *, tile_n=None):
    x = x.astype(jnp.float32)
    N = x.shape[0]
    if tile_n is None:
        tile_n = _choose_tile(N)

    # Ragged final block is handled by Pallas (masked writes); rows are
    # independent so no host-side pad/slice passes are needed.
    grid = pl.cdiv(N, tile_n)

    return pl.pallas_call(
        mlp_kernel,
        out_shape=jax.ShapeDtypeStruct((N, D_OUT), jnp.float32),
        grid_spec=pltpu.PrefetchScalarGridSpec(
            num_scalar_prefetch=0,
            grid=(grid,),
            in_specs=[
                pl.BlockSpec((tile_n, D_IN), lambda i: (i, 0)),    # unpadded x
                pl.BlockSpec((2, PAD, PAD), lambda i: (0, 0, 0)),  # resident W2,W3
                pl.BlockSpec((8, PAD), lambda i: (0, 0)),          # resident small slab
            ],
            out_specs=pl.BlockSpec((tile_n, D_OUT), lambda i: (i, 0)),
        ),
        compiler_params=pltpu.CompilerParams(
            dimension_semantics=("parallel",)),
    )(x, wstack, small)


def mlp_forward_ref(x, params):
    h = x.astype(jnp.float32)
    (w1, b1), (w2, b2), (w3, b3), (w4, b4) = params
    h = jnp.tanh(h @ w1 + b1)
    h = jnp.tanh(h @ w2 + b2)
    h = jnp.tanh(h @ w3 + b3)
    return h @ w4 + b4


if __name__ == "__main__":
    key = jax.random.PRNGKey(0)
    kx, kp = jax.random.split(key)

    # Small synthetic (x, y) coordinate batch, shape [N, 2] like the xy grid.
    N = 128
    x = jax.random.uniform(kx, (N, D_IN), jnp.float32, -1.0, 1.0)

    params = init_params(kp)
    wstack, small = pack_params(params)   # packed once, reused every forward

    fwd = jax.jit(mlp_forward)
    out = jax.block_until_ready(fwd(x, wstack, small))

    ref = mlp_forward_ref(x, params)
    assert out.shape == (N, D_OUT)
    assert jnp.allclose(out, ref, atol=1e-5, rtol=1e-5), "mismatch vs reference"

    print("KERNEL_OK")
</pallas_src>

<mosaic_0001>
module attributes {stable_mosaic.version = 11 : i64} {
  func.func @mlp_kernel(%arg0: i32, %arg1: memref<64x2xf32, #tpu.memory_space<vmem>>, %arg2: memref<2x128x128xf32, #tpu.memory_space<vmem>>, %arg3: memref<8x128xf32, #tpu.memory_space<vmem>>, %arg4: memref<64x1xf32, #tpu.memory_space<vmem>>) attributes {dimension_semantics = [#tpu.dimension_semantics<parallel>], iteration_bounds = array<i64: 2>, scalar_prefetch = 0 : i64, scratch_operands = 0 : i64, tpu.core_type = #tpu.core_type<tc>, window_params = [{transform_indices = @transform_0, window_bounds = array<i64: 64, 2>}, {pipeline_mode = #tpu.pipeline_mode<synchronous>, transform_indices = @transform_1, window_bounds = array<i64: 2, 128, 128>}, {pipeline_mode = #tpu.pipeline_mode<synchronous>, transform_indices = @transform_2, window_bounds = array<i64: 8, 128>}, {transform_indices = @transform_3, window_bounds = array<i64: 64, 1>}]} {
    %c0 = arith.constant 0 : index
    %c0_0 = arith.constant 0 : index
    %0 = vector.load %arg1[%c0, %c0_0] : memref<64x2xf32, #tpu.memory_space<vmem>>, vector<64x2xf32>
    %c0_1 = arith.constant 0 : index
    %c0_2 = arith.constant 0 : index
    %1 = vector.load %arg3[%c0_1, %c0_2] : memref<8x128xf32, #tpu.memory_space<vmem>>, vector<1x128xf32>
    %c1 = arith.constant 1 : index
    %c0_3 = arith.constant 0 : index
    %2 = vector.load %arg3[%c1, %c0_3] : memref<8x128xf32, #tpu.memory_space<vmem>>, vector<1x128xf32>
    %c2 = arith.constant 2 : index
    %c0_4 = arith.constant 0 : index
    %3 = vector.load %arg3[%c2, %c0_4] : memref<8x128xf32, #tpu.memory_space<vmem>>, vector<1x128xf32>
    %c3 = arith.constant 3 : index
    %c0_5 = arith.constant 0 : index
    %4 = vector.load %arg3[%c3, %c0_5] : memref<8x128xf32, #tpu.memory_space<vmem>>, vector<1x128xf32>
    %c4 = arith.constant 4 : index
    %c0_6 = arith.constant 0 : index
    %5 = vector.load %arg3[%c4, %c0_6] : memref<8x128xf32, #tpu.memory_space<vmem>>, vector<1x128xf32>
    %c5 = arith.constant 5 : index
    %c0_7 = arith.constant 0 : index
    %6 = vector.load %arg3[%c5, %c0_7] : memref<8x128xf32, #tpu.memory_space<vmem>>, vector<1x128xf32>
    %c6 = arith.constant 6 : index
    %c0_8 = arith.constant 0 : index
    %7 = vector.load %arg3[%c6, %c0_8] : memref<8x128xf32, #tpu.memory_space<vmem>>, vector<1x1xf32>
    %8 = vector.extract_strided_slice %0 {offsets = [0, 0], sizes = [64, 1], strides = [1, 1]} : vector<64x2xf32> to vector<64x1xf32>
    %9 = vector.broadcast %8 : vector<64x1xf32> to vector<64x128xf32>
    %10 = vector.broadcast %1 : vector<1x128xf32> to vector<64x128xf32>
    %11 = arith.mulf %9, %10 : vector<64x128xf32>
    %12 = vector.extract_strided_slice %0 {offsets = [0, 1], sizes = [64, 1], strides = [1, 1]} : vector<64x2xf32> to vector<64x1xf32>
    %13 = vector.broadcast %12 : vector<64x1xf32> to vector<64x128xf32>
    %14 = vector.broadcast %2 : vector<1x128xf32> to vector<64x128xf32>
    %15 = arith.mulf %13, %14 : vector<64x128xf32>
    %16 = arith.addf %11, %15 : vector<64x128xf32>
    %17 = vector.broadcast %3 : vector<1x128xf32> to vector<64x128xf32>
    %18 = arith.addf %16, %17 : vector<64x128xf32>
    %19 = math.tanh %18 : vector<64x128xf32>
    %c0_9 = arith.constant 0 : index
    %c0_10 = arith.constant 0 : index
    %c0_11 = arith.constant 0 : index
    %20 = vector.load %arg2[%c0_9, %c0_10, %c0_11] : memref<2x128x128xf32, #tpu.memory_space<vmem>>, vector<1x128x128xf32>
    %21 = vector.shape_cast %20 : vector<1x128x128xf32> to vector<128x128xf32>
    %cst = arith.constant dense<0.000000e+00> : vector<64x128xf32>
    %22 = tpu.matmul %19, %21, %cst {dimension_numbers = #tpu.dot_dimension_numbers<[1], [0], [0], [1], [0, 0, 1, 1], [], []>} : vector<64x128xf32>, vector<128x128xf32>, vector<64x128xf32> -> vector<64x128xf32>
    %23 = vector.broadcast %4 : vector<1x128xf32> to vector<64x128xf32>
    %24 = arith.addf %22, %23 : vector<64x128xf32>
    %25 = math.tanh %24 : vector<64x128xf32>
    %c1_12 = arith.constant 1 : index
    %c0_13 = arith.constant 0 : index
    %c0_14 = arith.constant 0 : index
    %26 = vector.load %arg2[%c1_12, %c0_13, %c0_14] : memref<2x128x128xf32, #tpu.memory_space<vmem>>, vector<1x128x128xf32>
    %27 = vector.shape_cast %26 : vector<1x128x128xf32> to vector<128x128xf32>
    %cst_15 = arith.constant dense<0.000000e+00> : vector<64x128xf32>
    %28 = tpu.matmul %25, %27, %cst_15 {dimension_numbers = #tpu.dot_dimension_numbers<[1], [0], [0], [1], [0, 0, 1, 1], [], []>} : vector<64x128xf32>, vector<128x128xf32>, vector<64x128xf32> -> vector<64x128xf32>
    %29 = vector.broadcast %5 : vector<1x128xf32> to vector<64x128xf32>
    %30 = arith.addf %28, %29 : vector<64x128xf32>
    %31 = math.tanh %30 : vector<64x128xf32>
    %32 = vector.broadcast %6 : vector<1x128xf32> to vector<64x128xf32>
    %33 = arith.mulf %31, %32 : vector<64x128xf32>
    %cst_16 = arith.constant dense<0.000000e+00> : vector<64xf32>
    %34 = vector.multi_reduction <add>, %33, %cst_16 [1] : vector<64x128xf32> to vector<64xf32>
    %35 = vector.shape_cast %34 : vector<64xf32> to vector<64x1xf32>
    %36 = vector.broadcast %7 : vector<1x1xf32> to vector<64x1xf32>
    %37 = arith.addf %35, %36 : vector<64x1xf32>
    %c0_17 = arith.constant 0 : index
    %c0_18 = arith.constant 0 : index
    %38 = vector.load %arg4[%c0_17, %c0_18] : memref<64x1xf32, #tpu.memory_space<vmem>>, vector<64x1xf32>
    tpu.vector_store %arg4[%c0_17, %c0_18], %37 {strides = array<i32>} : memref<64x1xf32, #tpu.memory_space<vmem>>, vector<64x1xf32>,
    return
  }
  func.func @transform_0(%arg0: i32) -> (i32, i32) {
    %c0_i32 = arith.constant 0 : i32
    %c0_i32_0 = arith.constant 0 : i32
    return %arg0, %c0_i32 : i32, i32
  }
  func.func @transform_1(%arg0: i32) -> (i32, i32, i32) {
    %c0_i32 = arith.constant 0 : i32
    %c0_i32_0 = arith.constant 0 : i32
    %c0_i32_1 = arith.constant 0 : i32
    %c0_i32_2 = arith.constant 0 : i32
    return %c0_i32, %c0_i32_0, %c0_i32_1 : i32, i32, i32
  }
  func.func @transform_2(%arg0: i32) -> (i32, i32) {
    %c0_i32 = arith.constant 0 : i32
    %c0_i32_0 = arith.constant 0 : i32
    %c0_i32_1 = arith.constant 0 : i32
    return %c0_i32, %c0_i32_0 : i32, i32
  }
  func.func @transform_3(%arg0: i32) -> (i32, i32) {
    %c0_i32 = arith.constant 0 : i32
    %c0_i32_0 = arith.constant 0 : i32
    return %arg0, %c0_i32 : i32, i32
  }
}

</mosaic_0001>

<llo_original>
// kernel: mlp_forward.1
$region0: #{mlp_forward.1}
  #allocation0 [shape = 'u32[]', space=smem, size = 0x4, offset = 0x4, fixed_abs, tag = 'smem constant byte address 0x4 - core index']
  #allocation1 [shape = 'u32[144,128]{1,0:T(1,128)}', space=vmem, size = 0x12000, scoped, tag = 'internal scratch']
  %s0 = inlined_call_operand.vmem [shape: f32[128,2], index: 0, kind: input, shape index: {}]
  %s1 = inlined_call_operand.hbm [shape: f32[2,128,128], index: 1, kind: input, shape index: {}]
  %s2 = inlined_call_operand.vmem [shape: f32[8,128], index: 2, kind: input, shape index: {}]
  %s3 = inlined_call_operand.vmem [shape: f32[128,1], index: 3, kind: output, shape index: {}]
  %s4 = sld [smem:[#allocation0]]
  $region49: #{mlp_forward.1} parent=0
    _
  %s6 = ssub.s32 1, %s4
  %s7 = scalar_select 0, %s6, %s4
  $region1: #{mlp_forward.1} parent=0
    #allocation2 [shape = 'u8[131072]{0}', space=vmem, size = 0x20000, scoped, tag = 'input window, operand 1, single buffered']
    #allocation3 [shape = 's32[2]{0}', space=sflag, size = 0x8, scoped, tag = 'scoped memory for mlp_forward.1']
    %8 = vsyncpa [#allocation3], 0
    loop: start=0, step=1, limit=4
    $region2: #{mlp_forward.1} parent=1 // loop_pre_header
      _
    $region3: #{mlp_forward.1} parent=1 // loop_header
      %s10 = sphi 0, %s14
      %p11 = scmp.ge.s32.totalorder %s10, 4
      %s20 = sphi 0, %s22
      %s23 = sphi 0, %s20
      %s24 = sphi 0, %s23
      %s40 = sphi 0, %s24
      %s44 = sphi 0, %s44
      %s46 = sphi 0, %s44
      %s47 = sphi 0, %s46
      %s61 = sphi 0, %s47
      %s65 = sphi 0, %s65
      %s67 = sphi 0, %s65
      %s68 = sphi 0, %s67
      %s82 = sphi 0, %s68
      %s88 = sphi 0, %s90
      %s91 = sphi 0, %s88
      %s92 = sphi 0, %s91
      %s108 = sphi 0, %s92
    $region4: #{mlp_forward.1} parent=1 // loop_header_branch
      %13 = sbr.rel (%p11) target = $region8
    $region5: #{mlp_forward.1} parent=1 // loop_body
      %s15 = ssub.s32 %s10, 1
      %s16 = ssub.s32 %s10, 2
      %s17 = sadd.s32 %s10, 1
      %s18 = ssub.s32 %s10, %s17
      %p19 = scmp.eq.s32.totalorder %s18, 0
      %s21 = sadd.s32 %s20, 1
      %s22 = scalar_select %p19, %s20, %s21
      %p25 = pneg %p19
      %p26 = scmp.eq.s32.totalorder %s10, 1
      %p27 = por %p25, %p26
      %p28 = scmp.ne.s32.totalorder %s20, %s23
      %p29 = scmp.eq.s32.totalorder %s10, 0
      %p30 = por %p28, %p29
      %p31 = scmp.ne.s32.totalorder %s20, %s23
      %p32 = scmp.eq.s32.totalorder %s15, 1
      %p33 = por %p31, %p32
      %p34 = scmp.ne.s32.totalorder %s23, %s24
      %p35 = scmp.eq.s32.totalorder %s15, 0
      %p36 = por %p34, %p35
      %p37 = scmp.ne.s32.totalorder %s23, %s24
      %p38 = scmp.eq.s32.totalorder %s16, 1
      %p39 = por %p37, %p38
      %p41 = scmp.ne.s32.totalorder %s24, %s40
      %p42 = scmp.eq.s32.totalorder %s16, 0
      %p43 = por %p41, %p42
      %s45 = sadd.s32 %s44, 1
      %p48 = scmp.eq.s32.totalorder %s10, 1
      %p49 = scmp.ne.s32.totalorder %s44, %s46
      %p50 = scmp.eq.s32.totalorder %s10, 0
      %p51 = por %p49, %p50
      %p52 = scmp.ne.s32.totalorder %s44, %s46
      %p53 = scmp.eq.s32.totalorder %s15, 1
      %p54 = por %p52, %p53
      %p55 = scmp.ne.s32.totalorder %s46, %s47
      %p56 = scmp.eq.s32.totalorder %s15, 0
      %p57 = por %p55, %p56
      %p58 = scmp.ne.s32.totalorder %s46, %s47
      %p59 = scmp.eq.s32.totalorder %s16, 1
      %p60 = por %p58, %p59
      %p62 = scmp.ne.s32.totalorder %s47, %s61
      %p63 = scmp.eq.s32.totalorder %s16, 0
      %p64 = por %p62, %p63
      %s66 = sadd.s32 %s65, 1
      %p69 = scmp.eq.s32.totalorder %s10, 1
      %p70 = scmp.ne.s32.totalorder %s65, %s67
      %p71 = scmp.eq.s32.totalorder %s10, 0
      %p72 = por %p70, %p71
      %p73 = scmp.ne.s32.totalorder %s65, %s67
      %p74 = scmp.eq.s32.totalorder %s15, 1
      %p75 = por %p73, %p74
      %p76 = scmp.ne.s32.totalorder %s67, %s68
      %p77 = scmp.eq.s32.totalorder %s15, 0
      %p78 = por %p76, %p77
      %p79 = scmp.ne.s32.totalorder %s67, %s68
      %p80 = scmp.eq.s32.totalorder %s16, 1
      %p81 = por %p79, %p80
      %p83 = scmp.ne.s32.totalorder %s68, %s82
      %p84 = scmp.eq.s32.totalorder %s16, 0
      %p85 = por %p83, %p84
      %s86 = ssub.s32 %s10, %s17
      %p87 = scmp.eq.s32.totalorder %s86, 0
      %s89 = sadd.s32 %s88, 1
      %s90 = scalar_select %p87, %s88, %s89
      %p93 = pneg %p87
      %p94 = scmp.eq.s32.totalorder %s10, 1
      %p95 = por %p93, %p94
      %p96 = scmp.ne.s32.totalorder %s88, %s91
      %p97 = scmp.eq.s32.totalorder %s10, 0
      %p98 = por %p96, %p97
      %p99 = scmp.ne.s32.totalorder %s88, %s91
      %p100 = scmp.eq.s32.totalorder %s15, 1
      %p101 = por %p99, %p100
      %p102 = scmp.ne.s32.totalorder %s91, %s92
      %p103 = scmp.eq.s32.totalorder %s15, 0
      %p104 = por %p102, %p103
      %p105 = scmp.ne.s32.totalorder %s91, %s92
      %p106 = scmp.eq.s32.totalorder %s16, 1
      %p107 = por %p105, %p106
      %p109 = scmp.ne.s32.totalorder %s92, %s108
      %p110 = scmp.eq.s32.totalorder %s16, 0
      %p111 = por %p109, %p110
      %p112 = scmp.le.s32.totalorder 1, %s10
      %p113 = scmp.lt.s32.totalorder %s10, 3
      %p114 = pnand %p112, %p113
      %p115 = pneg %p114
      // Predicated region
      $region9: #{mlp_forward.1} parent=5 // pred_check
        _
      $region10: #{mlp_forward.1} parent=5 // pred_check_branch
        %117 = sbr.rel (%p114) target = $region12
      $region11: #{mlp_forward.1} parent=5 // pred_region
        %s118 = ssub.s32 %s10, 1
        // Predicated region
        $region13: #{mlp_forward.1} parent=11 // pred_check
          %p119 = pneg %p57
        $region14: #{mlp_forward.1} parent=11 // pred_check_branch
          %121 = sbr.rel (%p119) target = $region16
        $region15: #{mlp_forward.1} parent=11 // pred_region
          %s123 = ssub.s32 4096, 4096
          %124 = vsyncadd [#allocation3], %s123
          %s125 = sshll.u32 [#allocation2], 4
          %s126 = int_to_ptr.vmem [resolvable:$true] %s125
          %131 = dma.hbm_to_vmem [thread:$0]  %s1, 4096, %s126, [#allocation3], 128, 128, 8
        $region16: #{mlp_forward.1} parent=11 // pred_fallthru
          _
        // Predicated region
        $region17: #{mlp_forward.1} parent=11 // pred_check
          %p132 = pneg %p78
        $region18: #{mlp_forward.1} parent=11 // pred_check_branch
          %134 = sbr.rel (%p132) target = $region20
        $region19: #{mlp_forward.1} parent=11 // pred_region
          _
        $region20: #{mlp_forward.1} parent=11 // pred_fallthru
          _
      $region12: #{mlp_forward.1} parent=5 // pred_fallthru
        _
      %p135 = scmp.lt.s32.totalorder %s10, 2
      // Predicated region
      $region21: #{mlp_forward.1} parent=5 // pred_check
        %p136 = pneg %p135
      $region22: #{mlp_forward.1} parent=5 // pred_check_branch
        %138 = sbr.rel (%p136) target = $region24
      $region23: #{mlp_forward.1} parent=5 // pred_region
        // Predicated region
        $region25: #{mlp_forward.1} parent=23 // pred_check
          %p139 = pneg %p30
        $region26: #{mlp_forward.1} parent=23 // pred_check_branch
          %141 = sbr.rel (%p139) target = $region28
        $region27: #{mlp_forward.1} parent=23 // pred_region
          %s142 = smul.u32 8, %s10
          %p143 = scmp.lt.s32.totalorder %s142, 15
          %s144 = scalar_select %p143, %s142, 15
          %s145 = smul.addr %s144, 8
          %s146 = scalar_lea.vmem %s0, %s145
          %s147 = smul.u32 8, %s10
        $region28: #{mlp_forward.1} parent=23 // pred_fallthru
          _
      $region24: #{mlp_forward.1} parent=5 // pred_fallthru
        _
      %p148 = scmp.le.s32.totalorder 1, %s10
      %p149 = scmp.lt.s32.totalorder %s10, 3
      %p150 = pnand %p148, %p149
      %p151 = pneg %p150
      // Predicated region
      $region29: #{mlp_forward.1} parent=5 // pred_check
        _
      $region30: #{mlp_forward.1} parent=5 // pred_check_branch
        %153 = sbr.rel (%p150) target = $region32
      $region31: #{mlp_forward.1} parent=5 // pred_region
        %s154 = ssub.s32 %s10, 1
        // Predicated region
        $region33: #{mlp_forward.1} parent=31 // pred_check
          %p155 = pneg %p57
        $region34: #{mlp_forward.1} parent=31 // pred_check_branch
          %157 = sbr.rel (%p155) target = $region36
        $region35: #{mlp_forward.1} parent=31 // pred_region
          %158 = dma.done [#allocation3], 4096
        $region36: #{mlp_forward.1} parent=31 // pred_fallthru
          _
        %s159 = smul.u32 8, %s15
        %p160 = scmp.lt.s32.totalorder %s159, 15
        %s161 = scalar_select %p160, %s159, 15
        %s162 = smul.addr %s161, 8
        %s163 = scalar_lea.vmem %s0, %s162
        %p164 = pneg %p36
        %p165 = pneg %p33
        %p166 = pneg %p57
        %p167 = pneg %p54
        %p168 = pneg %p78
        %p169 = pneg %p75
        %p170 = pneg %p104
        %p171 = pneg %p101
        %s172 = smul.u32 8, %s15
        %p173 = scmp.lt.s32.totalorder %s172, 15
        %s174 = scalar_select %p173, %s172, 15
        %s175 = smul.addr %s174, 8
        %s176 = scalar_lea.vmem %s3, %s175
        %s177 = smul.u32 8, %s15
        %p178 = scmp.lt.s32.totalorder %s177, 15
        %s179 = scalar_select %p178, %s177, 15
        %s180 = smul.addr %s179, 8
        %s181 = scalar_lea.vmem %s0, %s180
        %s182 = smul.u32 8, %s15
        %s183 = smul.u32 8, %s15
        %p184 = scmp.lt.s32.totalorder %s183, 15
        %s185 = scalar_select %p184, %s183, 15
        %s186 = smul.addr %s185, 8
        %s187 = scalar_lea.vmem %s3, %s186
        %s188 = smul.u32 8, %s15
        %v189 = vld [vmem:[%s181] sm:$0xff]
        %v190 = vld [vmem:[%s181 + $0x8] sm:$0xff]
        %v191 = vld [vmem:[%s181 + $0x10] sm:$0xff]
        %v192 = vld [vmem:[%s181 + $0x18] sm:$0xff]
        %v193 = vld [vmem:[%s181 + $0x20] sm:$0xff]
        %v194 = vld [vmem:[%s181 + $0x28] sm:$0xff]
        %v195 = vld [vmem:[%s181 + $0x30] sm:$0xff]
        %v196 = vld [vmem:[%s181 + $0x38] sm:$0xff]
        %v197 = vld [vmem:[%s2] sm:$0x1]
        %v198 = vld [vmem:[%s2 + $0x1] sm:$0x1]
        %v199 = vld [vmem:[%s2 + $0x2] sm:$0x1]
        %v200 = vld [vmem:[%s2 + $0x3] sm:$0x1]
        %v201 = vld [vmem:[%s2 + $0x4] sm:$0x1]
        %v202 = vld [vmem:[%s2 + $0x5] sm:$0x1]
        %v203 = vld [vmem:[%s2 + $0x6] sm:$0x1]
        %205 = vset.pattern.permute.xlu0 0
        %206 = vperm.xlu0 %205, %v189
        %v207 = vpop.permute.xlu0 %206
        %210 = vset.pattern.permute.xlu0 0
        %211 = vperm.xlu0 %210, %v190
        %v212 = vpop.permute.xlu0 %211
        %215 = vset.pattern.permute.xlu0 0
        %216 = vperm.xlu0 %215, %v191
        %v217 = vpop.permute.xlu0 %216
        %220 = vset.pattern.permute.xlu0 0
        %221 = vperm.xlu0 %220, %v192
        %v222 = vpop.permute.xlu0 %221
        %225 = vset.pattern.permute.xlu0 0
        %226 = vperm.xlu0 %225, %v193
        %v227 = vpop.permute.xlu0 %226
        %230 = vset.pattern.permute.xlu0 0
        %231 = vperm.xlu0 %230, %v194
        %v232 = vpop.permute.xlu0 %231
        %235 = vset.pattern.permute.xlu0 0
        %236 = vperm.xlu0 %235, %v195
        %v237 = vpop.permute.xlu0 %236
        %240 = vset.pattern.permute.xlu0 0
        %241 = vperm.xlu0 %240, %v196
        %v242 = vpop.permute.xlu0 %241
        %v244 = vlaneseq
        %v245 = vshrl.u32 %v244, 7
        %v246 = vsub.s32 0, %v245
        %v247 = vrot.slane %v197, %v246
        %v248 = vmul.f32 %v207, %v247
        %v249 = vmul.f32 %v212, %v247
        %v250 = vmul.f32 %v217, %v247
        %v251 = vmul.f32 %v222, %v247
        %v252 = vmul.f32 %v227, %v247
        %v253 = vmul.f32 %v232, %v247
        %v254 = vmul.f32 %v237, %v247
        %v255 = vmul.f32 %v242, %v247
        %256 = vset.pattern.permute.xlu0 1
        %257 = vperm.xlu0 %256, %v189
        %v258 = vpop.permute.xlu0 %257
        %260 = vset.pattern.permute.xlu0 1
        %261 = vperm.xlu0 %260, %v190
        %v262 = vpop.permute.xlu0 %261
        %264 = vset.pattern.permute.xlu0 1
        %265 = vperm.xlu0 %264, %v191
        %v266 = vpop.permute.xlu0 %265
        %268 = vset.pattern.permute.xlu0 1
        %269 = vperm.xlu0 %268, %v192
        %v270 = vpop.permute.xlu0 %269
        %272 = vset.pattern.permute.xlu0 1
        %273 = vperm.xlu0 %272, %v193
        %v274 = vpop.permute.xlu0 %273
        %276 = vset.pattern.permute.xlu0 1
        %277 = vperm.xlu0 %276, %v194
        %v278 = vpop.permute.xlu0 %277
        %280 = vset.pattern.permute.xlu0 1
        %281 = vperm.xlu0 %280, %v195
        %v282 = vpop.permute.xlu0 %281
        %284 = vset.pattern.permute.xlu0 1
        %285 = vperm.xlu0 %284, %v196
        %v286 = vpop.permute.xlu0 %285
        %v288 = vlaneseq
        %v289 = vshrl.u32 %v288, 7
        %v290 = vsub.s32 0, %v289
        %v291 = vrot.slane %v198, %v290
        %v292 = vmul.f32 %v258, %v291
        %v293 = vmul.f32 %v262, %v291
        %v294 = vmul.f32 %v266, %v291
        %v295 = vmul.f32 %v270, %v291
        %v296 = vmul.f32 %v274, %v291
        %v297 = vmul.f32 %v278, %v291
        %v298 = vmul.f32 %v282, %v291
        %v299 = vmul.f32 %v286, %v291
        %v300 = vadd.f32 %v248, %v292
        %v301 = vadd.f32 %v249, %v293
        %v302 = vadd.f32 %v250, %v294
        %v303 = vadd.f32 %v251, %v295
        %v304 = vadd.f32 %v252, %v296
        %v305 = vadd.f32 %v253, %v297
        %v306 = vadd.f32 %v254, %v298
        %v307 = vadd.f32 %v255, %v299
        %v308 = vlaneseq
        %v309 = vshrl.u32 %v308, 7
        %v310 = vsub.s32 0, %v309
        %v311 = vrot.slane %v199, %v310
        %v312 = vadd.f32 %v300, %v311
        %v313 = vadd.f32 %v301, %v311
        %v314 = vadd.f32 %v302, %v311
        %v315 = vadd.f32 %v303, %v311
        %v316 = vadd.f32 %v304, %v311
        %v317 = vadd.f32 %v305, %v311
        %v318 = vadd.f32 %v306, %v311
        %v319 = vadd.f32 %v307, %v311
        %v320 = vtanh.pop %v312
        %v321 = vtanh.pop %v313
        %v322 = vtanh.pop %v314
        %v323 = vtanh.pop %v315
        %v324 = vtanh.pop %v316
        %v325 = vtanh.pop %v317
        %v326 = vtanh.pop %v318
        %v327 = vtanh.pop %v319
        %v328 = vld [vmem:[#allocation2] sm:$0xff]
        %v329 = vld [vmem:[#allocation2 + $0x8] sm:$0xff]
        %v330 = vld [vmem:[#allocation2 + $0x10] sm:$0xff]
        %v331 = vld [vmem:[#allocation2 + $0x18] sm:$0xff]
        %v332 = vld [vmem:[#allocation2 + $0x20] sm:$0xff]
        %v333 = vld [vmem:[#allocation2 + $0x28] sm:$0xff]
        %v334 = vld [vmem:[#allocation2 + $0x30] sm:$0xff]
        %v335 = vld [vmem:[#allocation2 + $0x38] sm:$0xff]
        %v336 = vld [vmem:[#allocation2 + $0x40] sm:$0xff]
        %v337 = vld [vmem:[#allocation2 + $0x48] sm:$0xff]
        %v338 = vld [vmem:[#allocation2 + $0x50] sm:$0xff]
        %v339 = vld [vmem:[#allocation2 + $0x58] sm:$0xff]
        %v340 = vld [vmem:[#allocation2 + $0x60] sm:$0xff]
        %v341 = vld [vmem:[#allocation2 + $0x68] sm:$0xff]
        %v342 = vld [vmem:[#allocation2 + $0x70] sm:$0xff]
        %v343 = vld [vmem:[#allocation2 + $0x78] sm:$0xff]
        %v344 = vlaneseq
        %v345 = vshrl.u32 %v344, 7
        %v346 = vsub.s32 0, %v345
        %v347 = vrot.slane %v200, %v346
        %348 = vmatprep.subr.mxu0 0.0
        %349 = vmatpush1.msra.mxu0 %v343
        %350 = vmatprep.subr.mxu0 0.0
        %351 = vmatpush1.msra.mxu0 %v342
        %352 = vmatprep.subr.mxu0 0.0
        %353 = vmatpush1.msra.mxu0 %v341
        %354 = vmatprep.subr.mxu0 0.0
        %355 = vmatpush1.msra.mxu0 %v340
        %356 = vmatprep.subr.mxu0 0.0
        %357 = vmatpush1.msra.mxu0 %v339
        %358 = vmatprep.subr.mxu0 0.0
        %359 = vmatpush1.msra.mxu0 %v338
        %360 = vmatprep.subr.mxu0 0.0
        %361 = vmatpush1.msra.mxu0 %v337
        %362 = vmatprep.subr.mxu0 0.0
        %363 = vmatpush1.msra.mxu0 %v336
        %364 = vmatprep.subr.mxu0 0.0
        %365 = vmatpush1.msra.mxu0 %v335
        %366 = vmatprep.subr.mxu0 0.0
        %367 = vmatpush1.msra.mxu0 %v334
        %368 = vmatprep.subr.mxu0 0.0
        %369 = vmatpush1.msra.mxu0 %v333
        %370 = vmatprep.subr.mxu0 0.0
        %371 = vmatpush1.msra.mxu0 %v332
        %372 = vmatprep.subr.mxu0 0.0
        %373 = vmatpush1.msra.mxu0 %v331
        %374 = vmatprep.subr.mxu0 0.0
        %375 = vmatpush1.msra.mxu0 %v330
        %376 = vmatprep.subr.mxu0 0.0
        %377 = vmatpush1.msra.mxu0 %v329
        %378 = vmatprep.subr.mxu0 0.0
        %379 = vmatpush1.msra.mxu0 %v328
        %380 = vmatprep.subr.mxu0 0.0
        %381 = vmatpush2.msra.mxu0 0.0
        %382 = vmatprep.subr.mxu0 0.0
        %383 = vmatpush2.msra.mxu0 0.0
        %384 = vmatprep.subr.mxu0 0.0
        %385 = vmatpush2.msra.mxu0 0.0
        %386 = vmatprep.subr.mxu0 0.0
        %387 = vmatpush2.msra.mxu0 0.0
        %388 = vmatprep.subr.mxu0 0.0
        %389 = vmatpush2.msra.mxu0 0.0
        %390 = vmatprep.subr.mxu0 0.0
        %391 = vmatpush2.msra.mxu0 0.0
        %392 = vmatprep.subr.mxu0 0.0
        %393 = vmatpush2.msra.mxu0 0.0
        %394 = vmatprep.subr.mxu0 0.0
        %395 = vmatpush2.msra.mxu0 0.0
        %396 = vmatprep.subr.mxu0 0.0
        %397 = vmatpush2.msra.mxu0 0.0
        %398 = vmatprep.subr.mxu0 0.0
        %399 = vmatpush2.msra.mxu0 0.0
        %400 = vmatprep.subr.mxu0 0.0
        %401 = vmatpush2.msra.mxu0 0.0
        %402 = vmatprep.subr.mxu0 0.0
        %403 = vmatpush2.msra.mxu0 0.0
        %404 = vmatprep.subr.mxu0 0.0
        %405 = vmatpush2.msra.mxu0 0.0
        %406 = vmatprep.subr.mxu0 0.0
        %407 = vmatpush2.msra.mxu0 0.0
        %408 = vmatprep.subr.mxu0 0.0
        %409 = vmatpush2.msra.mxu0 0.0
        %410 = vmatprep.subr.mxu0 0.0
        %411 = vmatpush2.msra.mxu0 0.0
        %412 = vmatprep.mubr.f32.mxu0 0.0
        %413 = vmatmul.mubr.f32.gmra.mxu0 %v320
        %v414 = vpop.f32.mrf.mxu0
        %v415 = vadd.f32 %v347, %v414
        %v416 = vpop.f32.mrf.mxu0
        %417 = vmatprep.mubr.f32.mxu0 0.0
        %418 = vmatmul.mubr.f32.gmra.mxu0 %v321
        %v419 = vpop.f32.mrf.mxu0
        %v420 = vadd.f32 %v347, %v419
        %v421 = vpop.f32.mrf.mxu0
        %422 = vmatprep.mubr.f32.mxu0 0.0
        %423 = vmatmul.mubr.f32.gmra.mxu0 %v322
        %v424 = vpop.f32.mrf.mxu0
        %v425 = vadd.f32 %v347, %v424
        %v426 = vpop.f32.mrf.mxu0
        %427 = vmatprep.mubr.f32.mxu0 0.0
        %428 = vmatmul.mubr.f32.gmra.mxu0 %v323
        %v429 = vpop.f32.mrf.mxu0
        %v430 = vadd.f32 %v347, %v429
        %v431 = vpop.f32.mrf.mxu0
        %432 = vmatprep.mubr.f32.mxu0 0.0
        %433 = vmatmul.mubr.f32.gmra.mxu0 %v324
        %v434 = vpop.f32.mrf.mxu0
        %v435 = vadd.f32 %v347, %v434
        %v436 = vpop.f32.mrf.mxu0
        %437 = vmatprep.mubr.f32.mxu0 0.0
        %438 = vmatmul.mubr.f32.gmra.mxu0 %v325
        %v439 = vpop.f32.mrf.mxu0
        %v440 = vadd.f32 %v347, %v439
        %v441 = vpop.f32.mrf.mxu0
        %442 = vmatprep.mubr.f32.mxu0 0.0
        %443 = vmatmul.mubr.f32.gmra.mxu0 %v326
        %v444 = vpop.f32.mrf.mxu0
        %v445 = vadd.f32 %v347, %v444
        %v446 = vpop.f32.mrf.mxu0
        %447 = vmatprep.mubr.f32.mxu0 0.0
        %448 = vmatmul.mubr.f32.gmra.mxu0 %v327
        %v449 = vpop.f32.mrf.mxu0
        %v450 = vadd.f32 %v347, %v449
        %v451 = vpop.f32.mrf.mxu0
        %452 = vdwg.mxu0
        %v453 = vtanh.pop %v415
        %v454 = vtanh.pop %v420
        %v455 = vtanh.pop %v425
        %v456 = vtanh.pop %v430
        %v457 = vtanh.pop %v435
        %v458 = vtanh.pop %v440
        %v459 = vtanh.pop %v445
        %v460 = vtanh.pop %v450
        %s461 = scalar_lea.vmem [#allocation2], 128
        %v462 = vld [vmem:[%s461] sm:$0xff]
        %v463 = vld [vmem:[%s461 + $0x8] sm:$0xff]
        %v464 = vld [vmem:[%s461 + $0x10] sm:$0xff]
        %v465 = vld [vmem:[%s461 + $0x18] sm:$0xff]
        %v466 = vld [vmem:[%s461 + $0x20] sm:$0xff]
        %v467 = vld [vmem:[%s461 + $0x28] sm:$0xff]
        %v468 = vld [vmem:[%s461 + $0x30] sm:$0xff]
        %v469 = vld [vmem:[%s461 + $0x38] sm:$0xff]
        %v470 = vld [vmem:[%s461 + $0x40] sm:$0xff]
        %v471 = vld [vmem:[%s461 + $0x48] sm:$0xff]
        %v472 = vld [vmem:[%s461 + $0x50] sm:$0xff]
        %v473 = vld [vmem:[%s461 + $0x58] sm:$0xff]
        %v474 = vld [vmem:[%s461 + $0x60] sm:$0xff]
        %v475 = vld [vmem:[%s461 + $0x68] sm:$0xff]
        %v476 = vld [vmem:[%s461 + $0x70] sm:$0xff]
        %v477 = vld [vmem:[%s461 + $0x78] sm:$0xff]
        %v478 = vlaneseq
        %v479 = vshrl.u32 %v478, 7
        %v480 = vsub.s32 0, %v479
        %v481 = vrot.slane %v201, %v480
        %482 = vmatprep.subr.mxu0 0.0
        %483 = vmatpush1.msra.mxu0 %v477
        %484 = vmatprep.subr.mxu0 0.0
        %485 = vmatpush1.msra.mxu0 %v476
        %486 = vmatprep.subr.mxu0 0.0
        %487 = vmatpush1.msra.mxu0 %v475
        %488 = vmatprep.subr.mxu0 0.0
        %489 = vmatpush1.msra.mxu0 %v474
        %490 = vmatprep.subr.mxu0 0.0
        %491 = vmatpush1.msra.mxu0 %v473
        %492 = vmatprep.subr.mxu0 0.0
        %493 = vmatpush1.msra.mxu0 %v472
        %494 = vmatprep.subr.mxu0 0.0
        %495 = vmatpush1.msra.mxu0 %v471
        %496 = vmatprep.subr.mxu0 0.0
        %497 = vmatpush1.msra.mxu0 %v470
        %498 = vmatprep.subr.mxu0 0.0
        %499 = vmatpush1.msra.mxu0 %v469
        %500 = vmatprep.subr.mxu0 0.0
        %501 = vmatpush1.msra.mxu0 %v468
        %502 = vmatprep.subr.mxu0 0.0
        %503 = vmatpush1.msra.mxu0 %v467
        %504 = vmatprep.subr.mxu0 0.0
        %505 = vmatpush1.msra.mxu0 %v466
        %506 = vmatprep.subr.mxu0 0.0
        %507 = vmatpush1.msra.mxu0 %v465
        %508 = vmatprep.subr.mxu0 0.0
        %509 = vmatpush1.msra.mxu0 %v464
        %510 = vmatprep.subr.mxu0 0.0
        %511 = vmatpush1.msra.mxu0 %v463
        %512 = vmatprep.subr.mxu0 0.0
        %513 = vmatpush1.msra.mxu0 %v462
        %514 = vmatprep.subr.mxu0 0.0
        %515 = vmatpush2.msra.mxu0 0.0
        %516 = vmatprep.subr.mxu0 0.0
        %517 = vmatpush2.msra.mxu0 0.0
        %518 = vmatprep.subr.mxu0 0.0
        %519 = vmatpush2.msra.mxu0 0.0
        %520 = vmatprep.subr.mxu0 0.0
        %521 = vmatpush2.msra.mxu0 0.0
        %522 = vmatprep.subr.mxu0 0.0
        %523 = vmatpush2.msra.mxu0 0.0
        %524 = vmatprep.subr.mxu0 0.0
        %525 = vmatpush2.msra.mxu0 0.0
        %526 = vmatprep.subr.mxu0 0.0
        %527 = vmatpush2.msra.mxu0 0.0
        %528 = vmatprep.subr.mxu0 0.0
        %529 = vmatpush2.msra.mxu0 0.0
        %530 = vmatprep.subr.mxu0 0.0
        %531 = vmatpush2.msra.mxu0 0.0
        %532 = vmatprep.subr.mxu0 0.0
        %533 = vmatpush2.msra.mxu0 0.0
        %534 = vmatprep.subr.mxu0 0.0
        %535 = vmatpush2.msra.mxu0 0.0
        %536 = vmatprep.subr.mxu0 0.0
        %537 = vmatpush2.msra.mxu0 0.0
        %538 = vmatprep.subr.mxu0 0.0
        %539 = vmatpush2.msra.mxu0 0.0
        %540 = vmatprep.subr.mxu0 0.0
        %541 = vmatpush2.msra.mxu0 0.0
        %542 = vmatprep.subr.mxu0 0.0
        %543 = vmatpush2.msra.mxu0 0.0
        %544 = vmatprep.subr.mxu0 0.0
        %545 = vmatpush2.msra.mxu0 0.0
        %546 = vmatprep.mubr.f32.mxu0 0.0
        %547 = vmatmul.mubr.f32.gmra.mxu0 %v453
        %v548 = vpop.f32.mrf.mxu0
        %v549 = vadd.f32 %v481, %v548
        %v550 = vpop.f32.mrf.mxu0
        %551 = vmatprep.mubr.f32.mxu0 0.0
        %552 = vmatmul.mubr.f32.gmra.mxu0 %v454
        %v553 = vpop.f32.mrf.mxu0
        %v554 = vadd.f32 %v481, %v553
        %v555 = vpop.f32.mrf.mxu0
        %556 = vmatprep.mubr.f32.mxu0 0.0
        %557 = vmatmul.mubr.f32.gmra.mxu0 %v455
        %v558 = vpop.f32.mrf.mxu0
        %v559 = vadd.f32 %v481, %v558
        %v560 = vpop.f32.mrf.mxu0
        %561 = vmatprep.mubr.f32.mxu0 0.0
        %562 = vmatmul.mubr.f32.gmra.mxu0 %v456
        %v563 = vpop.f32.mrf.mxu0
        %v564 = vadd.f32 %v481, %v563
        %v565 = vpop.f32.mrf.mxu0
        %566 = vmatprep.mubr.f32.mxu0 0.0
        %567 = vmatmul.mubr.f32.gmra.mxu0 %v457
        %v568 = vpop.f32.mrf.mxu0
        %v569 = vadd.f32 %v481, %v568
        %v570 = vpop.f32.mrf.mxu0
        %571 = vmatprep.mubr.f32.mxu0 0.0
        %572 = vmatmul.mubr.f32.gmra.mxu0 %v458
        %v573 = vpop.f32.mrf.mxu0
        %v574 = vadd.f32 %v481, %v573
        %v575 = vpop.f32.mrf.mxu0
        %576 = vmatprep.mubr.f32.mxu0 0.0
        %577 = vmatmul.mubr.f32.gmra.mxu0 %v459
        %v578 = vpop.f32.mrf.mxu0
        %v579 = vadd.f32 %v481, %v578
        %v580 = vpop.f32.mrf.mxu0
        %581 = vmatprep.mubr.f32.mxu0 0.0
        %582 = vmatmul.mubr.f32.gmra.mxu0 %v460
        %v583 = vpop.f32.mrf.mxu0
        %v584 = vadd.f32 %v481, %v583
        %v585 = vpop.f32.mrf.mxu0
        %586 = vdwg.mxu0
        %v587 = vtanh.pop %v549
        %v588 = vtanh.pop %v554
        %v589 = vtanh.pop %v559
        %v590 = vtanh.pop %v564
        %v591 = vtanh.pop %v569
        %v592 = vtanh.pop %v574
        %v593 = vtanh.pop %v579
        %v594 = vtanh.pop %v584
        %v595 = vlaneseq
        %v596 = vshrl.u32 %v595, 7
        %v597 = vsub.s32 0, %v596
        %v598 = vrot.slane %v202, %v597
        %v599 = vmul.f32 %v587, %v598
        %v600 = vmul.f32 %v588, %v598
        %v601 = vmul.f32 %v589, %v598
        %v602 = vmul.f32 %v590, %v598
        %v603 = vmul.f32 %v591, %v598
        %v604 = vmul.f32 %v592, %v598
        %v605 = vmul.f32 %v593, %v598
        %v606 = vmul.f32 %v594, %v598
        %607 = vadd.xlane.f32.xlu0 %v599
        %v608 = vpop.xlane.xlu0 %607
        %609 = vadd.xlane.f32.xlu0 %v600
        %v610 = vpop.xlane.xlu0 %609
        %611 = vadd.xlane.f32.xlu0 %v601
        %v612 = vpop.xlane.xlu0 %611
        %613 = vadd.xlane.f32.xlu0 %v602
        %v614 = vpop.xlane.xlu0 %613
        %615 = vadd.xlane.f32.xlu0 %v603
        %v616 = vpop.xlane.xlu0 %615
        %617 = vadd.xlane.f32.xlu0 %v604
        %v618 = vpop.xlane.xlu0 %617
        %619 = vadd.xlane.f32.xlu0 %v605
        %v620 = vpop.xlane.xlu0 %619
        %621 = vadd.xlane.f32.xlu0 %v606
        %v622 = vpop.xlane.xlu0 %621
        %v623 = vlaneseq
        %v624 = vshrl.u32 %v623, 7
        %v625 = vsub.s32 0, %v624
        %v626 = vrot.slane %v203, %v625
        %v627 = vadd.f32 %v608, %v626
        %v628 = vadd.f32 %v610, %v626
        %v629 = vadd.f32 %v612, %v626
        %v630 = vadd.f32 %v614, %v626
        %v631 = vadd.f32 %v616, %v626
        %v632 = vadd.f32 %v618, %v626
        %v633 = vadd.f32 %v620, %v626
        %v634 = vadd.f32 %v622, %v626
        %vm635 = vcmask 7168
        %636 = vst.msk [vmem:[%s187] sm:$0xff] %vm635, %v627
        %637 = vst.msk [vmem:[%s187 + $0x8] sm:$0xff] %vm635, %v628
        %638 = vst.msk [vmem:[%s187 + $0x10] sm:$0xff] %vm635, %v629
        %639 = vst.msk [vmem:[%s187 + $0x18] sm:$0xff] %vm635, %v630
        %640 = vst.msk [vmem:[%s187 + $0x20] sm:$0xff] %vm635, %v631
        %641 = vst.msk [vmem:[%s187 + $0x28] sm:$0xff] %vm635, %v632
        %642 = vst.msk [vmem:[%s187 + $0x30] sm:$0xff] %vm635, %v633
        %643 = vst.msk [vmem:[%s187 + $0x38] sm:$0xff] %vm635, %v634
        %s644 = smul.u32 8, %s15
        %p645 = scmp.lt.s32.totalorder %s644, 15
        %s646 = scalar_select %p645, %s644, 15
        %s647 = smul.addr %s646, 8
        %s648 = scalar_lea.vmem %s3, %s647
        // Predicated region
        $region37: #{mlp_forward.1} parent=31 // pred_check
          %p649 = pneg %p101
        $region38: #{mlp_forward.1} parent=31 // pred_check_branch
          %651 = sbr.rel (%p649) target = $region40
        $region39: #{mlp_forward.1} parent=31 // pred_region
          %s652 = smul.u32 8, %s15
        $region40: #{mlp_forward.1} parent=31 // pred_fallthru
          _
      $region32: #{mlp_forward.1} parent=5 // pred_fallthru
        _
      %p653 = scmp.le.s32.totalorder 2, %s10
      // Predicated region
      $region41: #{mlp_forward.1} parent=5 // pred_check
        %p654 = pneg %p653
      $region42: #{mlp_forward.1} parent=5 // pred_check_branch
        %656 = sbr.rel (%p654) target = $region44
      $region43: #{mlp_forward.1} parent=5 // pred_region
        %s657 = ssub.s32 %s10, 2
        // Predicated region
        $region45: #{mlp_forward.1} parent=43 // pred_check
          %p658 = pneg %p107
        $region46: #{mlp_forward.1} parent=43 // pred_check_branch
          %660 = sbr.rel (%p658) target = $region48
        $region47: #{mlp_forward.1} parent=43 // pred_region
          %s661 = smul.u32 8, %s16
          %p662 = scmp.lt.s32.totalorder %s661, 15
          %s663 = scalar_select %p662, %s661, 15
          %s664 = smul.addr %s663, 8
          %s665 = scalar_lea.vmem %s3, %s664
        $region48: #{mlp_forward.1} parent=43 // pred_fallthru
          _
      $region44: #{mlp_forward.1} parent=5 // pred_fallthru
        _
    $region6: #{mlp_forward.1} parent=1 // loop_footer
      %s14 = sadd.s32 1, %s10
    $region7: #{mlp_forward.1} parent=1 // loop_footer_branch
      %9 = sbr.rel target = $region3
    $region8: #{mlp_forward.1} parent=1 // loop_exit
      _
    %666 = vsyncpa [#allocation3], 1
    %s667 = scalar_lea.sflag [#allocation3], 1
    %668 = vsyncpa %s667, 1

</llo_original>
